<compile_context>
chip_gen: v6e
topology: v6e:2x2x1
jax: 0.10.0
libtpu: 0.0.40
codegen_flags: <defaults>
</compile_context>

<pallas_src>
import functools

import jax
import jax.numpy as jnp
from jax import lax
from jax.experimental import pallas as pl
from jax.experimental.pallas import tpu as pltpu


def _layernorm_kernel(x_ref, w_ref, b_ref, o_ref, *, eps: float):
    # x_ref: (TB, N)   w_ref, b_ref: (1, N)   o_ref: (TB, N)
    # Block covers the FULL normalized axis N -> plain reductions are exact,
    # no lane mask needed.
    x = x_ref[...].astype(jnp.float32)
    mean = jnp.mean(x, axis=-1, keepdims=True)
    xc = x - mean
    var = jnp.mean(xc * xc, axis=-1, keepdims=True)        # biased variance (PyTorch)
    rstd = lax.rsqrt(var + eps)
    y = xc * rstd * w_ref[...].astype(jnp.float32) + b_ref[...].astype(jnp.float32)
    o_ref[...] = y.astype(o_ref.dtype)


def _vmem_budgets():
    """(buffer budget bytes, scoped vmem_limit_bytes), generation-aware."""
    try:
        kind = jax.devices()[0].device_kind.lower()
    except Exception:  # pragma: no cover - no devices at trace time
        kind = ""
    if ("v5" in kind) or ("v6" in kind):
        # 128 MiB physical VMEM: allow big, roofline-friendly tiles.
        return 48 * 1024 * 1024, 64 * 1024 * 1024
    # v7x (64 MiB physical) or unknown: stay conservative.
    return 16 * 1024 * 1024, 32 * 1024 * 1024


def layer_norm_pallas(x, weight, bias, idx, eps=1e-5):
    """x: (B, D0, D2); weight, bias: (D0, I, D2); idx: int index into axis 1 of params."""
    B, D0, D2 = x.shape
    N = D0 * D2

    # Glue: parameter slicing / flattening (tiny, plain JAX). No padding anywhere:
    # the full-N last block dim equals the array extent, which is always legal.
    w = weight[:, idx, :].reshape(1, N)
    b = bias[:, idx, :].reshape(1, N)
    x2 = x.reshape(B, N)

    itemsize = jnp.dtype(x.dtype).itemsize
    # Sublane packing: (8,128) f32, (16,128) bf16/f16, (32,128) int8/fp8.
    row_mult = 8 if itemsize >= 4 else (16 if itemsize == 2 else 32)

    vmem_budget, vmem_limit = _vmem_budgets()

    # Working set per row: 2x double-buffered input + 2x output (native dtype)
    # plus ~3 f32 tile-sized temps (x_f32, xc, y) inside the kernel.
    bytes_per_row = N * (4 * itemsize + 3 * 4)
    tb_budget = (vmem_budget // bytes_per_row) // row_mult * row_mult
    # Byte cap on the x block itself (~4 MiB) instead of a fixed row cap:
    # amortizes the ~0.35 us per-grid-step overhead even when N is small.
    block_byte_cap = 4 * 1024 * 1024
    tb_cap = (block_byte_cap // max(1, N * itemsize)) // row_mult * row_mult
    tb = max(row_mult, min(tb_budget, tb_cap))

    if B >= 2 * row_mult:
        # Guarantee >= 2 grid steps so the "parallel" batch axis shards across
        # both TensorCores on v7x (no-op perf-wise on 1-TC v5e/v6e).
        half = -(-B // 2)                             # ceil(B/2)
        half = -(-half // row_mult) * row_mult        # round up to row_mult
        tb = min(tb, half)
    if tb >= B:
        tb = B                                        # full-extent block is always legal

    grid = (pl.cdiv(B, tb),)
    # NOTE: when B % tb != 0 the last block's out-of-range rows are discarded by
    # Pallas; their garbage values flowing through rsqrt are benign by design.

    out = pl.pallas_call(
        functools.partial(_layernorm_kernel, eps=eps),
        out_shape=jax.ShapeDtypeStruct((B, N), x.dtype),
        grid=grid,
        in_specs=[
            pl.BlockSpec((tb, N), lambda i: (i, 0)),   # x tile, pipelined over batch
            pl.BlockSpec((1, N), lambda i: (0, 0)),    # weight: fetched once, resident
            pl.BlockSpec((1, N), lambda i: (0, 0)),    # bias:   fetched once, resident
        ],
        out_specs=pl.BlockSpec((tb, N), lambda i: (i, 0)),
        compiler_params=pltpu.CompilerParams(
            dimension_semantics=("parallel",),         # megacore sharding on v7x
            vmem_limit_bytes=vmem_limit,
        ),
    )(x2, w, b)

    return out.reshape(B, D0, D2)


if __name__ == "__main__":
    key = jax.random.PRNGKey(0)
    k_x, k_w, k_b = jax.random.split(key, 3)

    # Module config: normalized_shape = (D0, I, D2) -> weight/bias shape (D0, I, D2).
    # Input shape implied by forward: (B, D0, D2), normalized over (D0, D2).
    B, D0, I, D2 = 2, 4, 8, 32
    eps = 1e-5
    idx = 3

    # Deterministic "parameters". reset_parameters() sets weight=1, bias=0; we perturb
    # them deterministically so the affine path is actually exercised.
    weight = jnp.ones((D0, I, D2), jnp.float32) + 0.1 * jax.random.normal(k_w, (D0, I, D2), jnp.float32)
    bias = jnp.zeros((D0, I, D2), jnp.float32) + 0.1 * jax.random.normal(k_b, (D0, I, D2), jnp.float32)
    x = jax.random.normal(k_x, (B, D0, D2), jnp.float32)

    out = layer_norm_pallas(x, weight, bias, idx, eps=eps)
    out = jax.block_until_ready(out)

    # Pure-JAX reference check (same math as F.layer_norm over dims (1, 2)).
    mean = jnp.mean(x, axis=(1, 2), keepdims=True)
    var = jnp.mean((x - mean) ** 2, axis=(1, 2), keepdims=True)
    ref = (x - mean) * lax.rsqrt(var + eps) * weight[:, idx, :][None] + bias[:, idx, :][None]
    assert jnp.allclose(out, ref, atol=1e-5, rtol=1e-5), "mismatch vs reference"

    print("KERNEL_OK")
</pallas_src>

<mosaic_0001>
module attributes {stable_mosaic.version = 11 : i64} {
  func.func @_layernorm_kernel(%arg0: i32, %arg1: memref<2x128xf32, #tpu.memory_space<vmem>>, %arg2: memref<1x128xf32, #tpu.memory_space<vmem>>, %arg3: memref<1x128xf32, #tpu.memory_space<vmem>>, %arg4: memref<2x128xf32, #tpu.memory_space<vmem>>) attributes {dimension_semantics = [#tpu.dimension_semantics<parallel>], iteration_bounds = array<i64: 1>, scalar_prefetch = 0 : i64, scratch_operands = 0 : i64, tpu.core_type = #tpu.core_type<tc>, window_params = [{transform_indices = @transform_0, window_bounds = array<i64: 2, 128>}, {pipeline_mode = #tpu.pipeline_mode<synchronous>, transform_indices = @transform_1, window_bounds = array<i64: 1, 128>}, {pipeline_mode = #tpu.pipeline_mode<synchronous>, transform_indices = @transform_2, window_bounds = array<i64: 1, 128>}, {transform_indices = @transform_3, window_bounds = array<i64: 2, 128>}]} {
    %c0 = arith.constant 0 : index
    %c0_0 = arith.constant 0 : index
    %0 = vector.load %arg1[%c0, %c0_0] : memref<2x128xf32, #tpu.memory_space<vmem>>, vector<2x128xf32>
    %cst = arith.constant dense<0.000000e+00> : vector<2xf32>
    %1 = vector.multi_reduction <add>, %0, %cst [1] : vector<2x128xf32> to vector<2xf32>
    %2 = vector.shape_cast %1 : vector<2xf32> to vector<2x1xf32>
    %cst_1 = arith.constant 1.280000e+02 : f32
    %3 = vector.broadcast %cst_1 : f32 to vector<2x1xf32>
    %4 = arith.divf %2, %3 : vector<2x1xf32>
    %5 = vector.broadcast %4 : vector<2x1xf32> to vector<2x128xf32>
    %6 = arith.subf %0, %5 : vector<2x128xf32>
    %7 = arith.mulf %6, %6 : vector<2x128xf32>
    %cst_2 = arith.constant dense<0.000000e+00> : vector<2xf32>
    %8 = vector.multi_reduction <add>, %7, %cst_2 [1] : vector<2x128xf32> to vector<2xf32>
    %9 = vector.shape_cast %8 : vector<2xf32> to vector<2x1xf32>
    %cst_3 = arith.constant 1.280000e+02 : f32
    %10 = vector.broadcast %cst_3 : f32 to vector<2x1xf32>
    %11 = arith.divf %9, %10 : vector<2x1xf32>
    %cst_4 = arith.constant 9.99999974E-6 : f32
    %12 = vector.broadcast %cst_4 : f32 to vector<2x1xf32>
    %13 = arith.addf %11, %12 : vector<2x1xf32>
    %14 = math.rsqrt %13 : vector<2x1xf32>
    %15 = vector.broadcast %14 : vector<2x1xf32> to vector<2x128xf32>
    %16 = arith.mulf %6, %15 : vector<2x128xf32>
    %c0_5 = arith.constant 0 : index
    %c0_6 = arith.constant 0 : index
    %17 = vector.load %arg2[%c0_5, %c0_6] : memref<1x128xf32, #tpu.memory_space<vmem>>, vector<1x128xf32>
    %18 = vector.broadcast %17 : vector<1x128xf32> to vector<2x128xf32>
    %19 = arith.mulf %16, %18 : vector<2x128xf32>
    %c0_7 = arith.constant 0 : index
    %c0_8 = arith.constant 0 : index
    %20 = vector.load %arg3[%c0_7, %c0_8] : memref<1x128xf32, #tpu.memory_space<vmem>>, vector<1x128xf32>
    %21 = vector.broadcast %20 : vector<1x128xf32> to vector<2x128xf32>
    %22 = arith.addf %19, %21 : vector<2x128xf32>
    %c0_9 = arith.constant 0 : index
    %c0_10 = arith.constant 0 : index
    %23 = vector.load %arg4[%c0_9, %c0_10] : memref<2x128xf32, #tpu.memory_space<vmem>>, vector<2x128xf32>
    tpu.vector_store %arg4[%c0_9, %c0_10], %22 {strides = array<i32>} : memref<2x128xf32, #tpu.memory_space<vmem>>, vector<2x128xf32>,
    return
  }
  func.func @transform_0(%arg0: i32) -> (i32, i32) {
    %c0_i32 = arith.constant 0 : i32
    %c0_i32_0 = arith.constant 0 : i32
    return %arg0, %c0_i32 : i32, i32
  }
  func.func @transform_1(%arg0: i32) -> (i32, i32) {
    %c0_i32 = arith.constant 0 : i32
    %c0_i32_0 = arith.constant 0 : i32
    %c0_i32_1 = arith.constant 0 : i32
    return %c0_i32, %c0_i32_0 : i32, i32
  }
  func.func @transform_2(%arg0: i32) -> (i32, i32) {
    %c0_i32 = arith.constant 0 : i32
    %c0_i32_0 = arith.constant 0 : i32
    %c0_i32_1 = arith.constant 0 : i32
    return %c0_i32, %c0_i32_0 : i32, i32
  }
  func.func @transform_3(%arg0: i32) -> (i32, i32) {
    %c0_i32 = arith.constant 0 : i32
    %c0_i32_0 = arith.constant 0 : i32
    return %arg0, %c0_i32 : i32, i32
  }
}

</mosaic_0001>

<llo_original>
// kernel: tpu_custom_call.1
$region0: #{tpu_custom_call.1}
  #allocation0 [shape = 'u32[]', space=smem, size = 0x4, offset = 0x4, fixed_abs, tag = 'smem constant byte address 0x4 - core index']
  #allocation1 [shape = 'u32[144,128]{1,0:T(1,128)}', space=vmem, size = 0x12000, scoped, tag = 'internal scratch']
  %s0 = inlined_call_operand.hbm [shape: f32[2,128], index: 0, kind: input, shape index: {}]
  %s1 = inlined_call_operand.vmem [shape: f32[1,128], index: 1, kind: input, shape index: {}]
  %s2 = inlined_call_operand.vmem [shape: f32[1,128], index: 2, kind: input, shape index: {}]
  %s3 = inlined_call_operand.hbm [shape: f32[2,128], index: 3, kind: output, shape index: {}]
  %s4 = sld [smem:[#allocation0]]
  $region26: #{tpu_custom_call.1} parent=0
    _
  %s6 = ssub.s32 1, %s4
  %s7 = scalar_select 0, %s6, %s4
  $region1: #{tpu_custom_call.1} parent=0
    #allocation2 [shape = 'u8[1024]{0}', space=vmem, size = 0x400, scoped, tag = 'input window, operand 0, single buffered']
    #allocation3 [shape = 's32[1]{0}', space=sflag, size = 0x4, scoped, tag = 'scoped memory for tpu_custom_call.1']
    #allocation4 [shape = 's32[1]{0}', space=sflag, size = 0x4, scoped, tag = 'scoped memory for tpu_custom_call.1']
    #allocation5 [shape = 'u8[1024]{0}', space=vmem, size = 0x400, scoped, tag = 'output window, operand 0, single buffered']
    %8 = vsyncpa [#allocation3], 0
    %9 = vsyncpa [#allocation4], 0
    // Predicated region
    $region2: #{tpu_custom_call.1} parent=1 // pred_check
      _
    $region3: #{tpu_custom_call.1} parent=1 // pred_check_branch
      %11 = sbr.rel (0) target = $region5
    $region4: #{tpu_custom_call.1} parent=1 // pred_region
      %s13 = ssub.s32 32, 32
      %14 = vsyncadd [#allocation3], %s13
      %s16 = sshll.u32 [#allocation2], 4
      %s17 = int_to_ptr.vmem [resolvable:$true] %s16
      %19 = dma.hbm_to_vmem [thread:$0]  %s0, 32, %s17, [#allocation3]
    $region5: #{tpu_custom_call.1} parent=1 // pred_fallthru
      _
    // Predicated region
    $region6: #{tpu_custom_call.1} parent=1 // pred_check
      _
    $region7: #{tpu_custom_call.1} parent=1 // pred_check_branch
      %21 = sbr.rel (0) target = $region9
    $region8: #{tpu_custom_call.1} parent=1 // pred_region
      _
    $region9: #{tpu_custom_call.1} parent=1 // pred_fallthru
      _
    // Predicated region
    $region10: #{tpu_custom_call.1} parent=1 // pred_check
      _
    $region11: #{tpu_custom_call.1} parent=1 // pred_check_branch
      %23 = sbr.rel (0) target = $region13
    $region12: #{tpu_custom_call.1} parent=1 // pred_region
      _
    $region13: #{tpu_custom_call.1} parent=1 // pred_fallthru
      _
    // Predicated region
    $region14: #{tpu_custom_call.1} parent=1 // pred_check
      _
    $region15: #{tpu_custom_call.1} parent=1 // pred_check_branch
      %25 = sbr.rel (0) target = $region17
    $region16: #{tpu_custom_call.1} parent=1 // pred_region
      %26 = dma.done [#allocation3], 32
    $region17: #{tpu_custom_call.1} parent=1 // pred_fallthru
      _
    %v27 = vld [vmem:[#allocation2] sm:$0x3]
    %vm28 = vcmask 1041408
    %v29 = vsel %vm28, %v27, 0.0
    %30 = vadd.xlane.f32.xlu0 %v29
    %v31 = vpop.xlane.xlu0 %30
    %v32 = vrcp.pop 128.0
    %v33 = vmul.f32 %v31, %v32
    %v34 = vsub.f32 %v27, %v33
    %v35 = vmul.f32 %v34, %v34
    %v36 = vsel %vm28, %v35, 0.0
    %37 = vadd.xlane.f32.xlu0 %v36
    %v38 = vpop.xlane.xlu0 %37
    %v39 = vmul.f32 %v38, %v32
    %v40 = vadd.f32 %v39, 1e-05
    %v41 = vrsqrt.pop %v40
    %v42 = vmul.f32 %v34, %v41
    %v43 = vld [vmem:[%s1] sm:$0x1]
    %v45 = vlaneseq
    %v46 = vshrl.u32 %v45, 7
    %v47 = vsub.s32 0, %v46
    %v48 = vrot.slane %v43, %v47
    %v50 = vmul.f32 %v42, %v48
    %v51 = vld [vmem:[%s2] sm:$0x1]
    %v53 = vlaneseq
    %v54 = vshrl.u32 %v53, 7
    %v55 = vsub.s32 0, %v54
    %v56 = vrot.slane %v51, %v55
    %v58 = vadd.f32 %v50, %v56
    %59 = vst [vmem:[#allocation5] sm:$0x3] %v58
    // Predicated region
    $region18: #{tpu_custom_call.1} parent=1 // pred_check
      _
    $region19: #{tpu_custom_call.1} parent=1 // pred_check_branch
      %61 = sbr.rel (0) target = $region21
    $region20: #{tpu_custom_call.1} parent=1 // pred_region
      %s63 = ssub.s32 32, 32
      %64 = vsyncadd [#allocation4], %s63
      %s66 = sshll.u32 [#allocation5], 4
      %s67 = int_to_ptr.vmem [resolvable:$true] %s66
      %69 = dma.vmem_to_hbm [thread:$0]  %s67, 32, %s3, [#allocation4]
    $region21: #{tpu_custom_call.1} parent=1 // pred_fallthru
      _
    // Predicated region
    $region22: #{tpu_custom_call.1} parent=1 // pred_check
      _
    $region23: #{tpu_custom_call.1} parent=1 // pred_check_branch
      %71 = sbr.rel (0) target = $region25
    $region24: #{tpu_custom_call.1} parent=1 // pred_region
      %72 = dma.done [#allocation4], 32
    $region25: #{tpu_custom_call.1} parent=1 // pred_fallthru
      _
    %73 = vsyncpa [#allocation3], 1
    %74 = vsyncpa [#allocation4], 1

</llo_original>
